<compile_context>
chip_gen: v5e
topology: v5e:2x2
jax: 0.10.0
libtpu: 0.0.40
codegen_flags: <defaults>
</compile_context>

<pallas_src>
import math

import jax
import jax.numpy as jnp
from jax import lax
from jax.experimental import pallas as pl
from jax.experimental.pallas import tpu as pltpu

EPS = 1e-8
_LANES = 128
_SUBLANES = 8
_CHUNK_ROWS = 512          # 512x128 f32 per chunk per input
_MAX_CORES = 2


def _cdiv(a, b):
    return -(-a // b)


def _round_up(x, m):
    return _cdiv(x, m) * m


def _num_tensorcores():
    """Best-effort TensorCore count (1 on v5e/v6e, 2 on v7x). Defaults to 1."""
    try:
        info = pltpu.get_tpu_info()
    except Exception:
        return 1
    for name in ("num_cores", "num_tensorcores", "tensorcores_per_chip",
                 "cores_per_chip", "core_count"):
        v = getattr(info, name, None)
        if isinstance(v, int) and v >= 1:
            return min(v, _MAX_CORES)
    return 1


def _sublane_multiple(*dtypes):
    """Min sublane multiple for the block's 2nd-minor dim given input dtypes."""
    m = _SUBLANES
    for dt in dtypes:
        isz = jnp.dtype(dt).itemsize
        m = max(m, _SUBLANES * max(1, 4 // max(isz, 1)))
    return m


def _make_kernel(*, tile_rows, chunk_rows, steps, valid_rows, need_mask):
    assert tile_rows % chunk_rows == 0 and chunk_rows % _SUBLANES == 0
    n_chunks = tile_rows // chunk_rows

    def kernel(pred_ref, gt_ref, acc_ref):
        # acc_ref block: (1, 3, 8, 128) f32, resident across the inner
        # ("arbitrary") axis -> per-core vector accumulator.
        #   channel 0: pos_loss partials, 1: neg_loss partials, 2: num_pos.
        @pl.when(pl.program_id(1) == 0)
        def _init():
            acc_ref[...] = jnp.zeros_like(acc_ref)

        # Global row offset of this block (un-clamped: duplicate blocks coming
        # from the clamped index_map are fully masked out below).
        block_row0 = (pl.program_id(0) * steps + pl.program_id(1)) * tile_rows

        def fold(x):
            # (chunk_rows, 128) -> (chunk_rows//8, 8, 128) summed over axis 0:
            # pure VPU vreg adds, no cross-lane (XLU) work.
            return jnp.sum(x.reshape(-1, _SUBLANES, _LANES), axis=0)

        def one_chunk(c, carry):
            pos_acc, neg_acc, cnt_acc = carry
            r0 = pl.multiple_of(c * chunk_rows, chunk_rows)
            pred = pred_ref[pl.ds(r0, chunk_rows), :].astype(jnp.float32)
            gt = gt_ref[pl.ds(r0, chunk_rows), :].astype(jnp.float32)

            if need_mask:
                # Zero out rows past the valid extent (ragged tail / blocks
                # that over-hang the array). pred=0, gt=0 contributes exactly
                # 0 to all three partial sums.
                row_ids = lax.broadcasted_iota(jnp.int32, (chunk_rows, 1), 0)
                valid = (block_row0 + r0 + row_ids) < valid_rows
                pred = jnp.where(valid, pred, 0.0)
                gt = jnp.where(valid, gt, 0.0)

            is_pos = gt == 1.0          # gt.eq(1)
            is_neg = gt < 1.0           # gt.lt(1)

            one_m_pred = 1.0 - pred
            one_m_gt = 1.0 - gt
            neg_w = one_m_gt * one_m_gt
            neg_w = neg_w * neg_w       # (1 - gt)^4

            # One EUP log per element: pos/neg masks are disjoint, so select
            # the log argument instead of computing two logs.
            log_val = jnp.log(jnp.where(is_pos, pred, one_m_pred) + EPS)

            pos_elem = jnp.where(is_pos, log_val * (one_m_pred * one_m_pred), 0.0)
            neg_elem = jnp.where(is_neg, log_val * (pred * pred) * neg_w, 0.0)
            cnt_elem = jnp.where(is_pos, 1.0, 0.0)

            return (pos_acc + fold(pos_elem),
                    neg_acc + fold(neg_elem),
                    cnt_acc + fold(cnt_elem))

        zero = jnp.zeros((_SUBLANES, _LANES), jnp.float32)
        pos, neg, cnt = lax.fori_loop(0, n_chunks, one_chunk,
                                      (zero, zero, zero), unroll=True)

        acc_ref[0, 0] += pos
        acc_ref[0, 1] += neg
        acc_ref[0, 2] += cnt

    return kernel


def focal_loss(pred, gt):
    """Pallas TPU equivalent of FocalLoss().forward(pred, gt)."""
    assert pred.shape == gt.shape, (pred.shape, gt.shape)

    total = int(math.prod(pred.shape)) if pred.shape else 1

    # Keep native dtypes (no f32 up-cast pass); ravel/reshape are free for
    # contiguous arrays.
    pred_flat = jnp.ravel(pred)
    gt_flat = jnp.ravel(gt)

    rows = max(1, _cdiv(total, _LANES))
    pad = rows * _LANES - total
    if pad:
        # Only when numel % 128 != 0; pred=gt=0 padding contributes exactly 0.
        pred_flat = jnp.pad(pred_flat, (0, pad))
        gt_flat = jnp.pad(gt_flat, (0, pad))
    pred2d = pred_flat.reshape(rows, _LANES)
    gt2d = gt_flat.reshape(rows, _LANES)

    n_cores = _num_tensorcores()
    target_rows = 8192 if n_cores > 1 else 4096

    sub = _sublane_multiple(pred.dtype, gt.dtype)
    rows_al = _round_up(rows, sub)
    tile_rows = min(target_rows, rows_al)
    chunk_rows = _CHUNK_ROWS if tile_rows % _CHUNK_ROWS == 0 else tile_rows

    steps = max(1, _cdiv(rows, n_cores * tile_rows))
    covered_rows = n_cores * steps * tile_rows
    need_mask = covered_rows != rows

    # Clamp block indices so no block starts fully outside the array (the
    # duplicated blocks this creates are zero-masked inside the kernel).
    last_block = _cdiv(rows, tile_rows) - 1

    def in_index(c, i):
        return (jnp.minimum(c * steps + i, last_block), 0)

    kernel = _make_kernel(tile_rows=tile_rows, chunk_rows=chunk_rows,
                          steps=steps, valid_rows=rows, need_mask=need_mask)

    bytes_in = total * (jnp.dtype(pred.dtype).itemsize
                        + jnp.dtype(gt.dtype).itemsize)
    cost = pl.CostEstimate(
        flops=18 * total,
        transcendentals=total,
        bytes_accessed=bytes_in + n_cores * 3 * _SUBLANES * _LANES * 4,
    )

    partials = pl.pallas_call(
        kernel,
        out_shape=jax.ShapeDtypeStruct((n_cores, 3, _SUBLANES, _LANES),
                                       jnp.float32),
        grid=(n_cores, steps),
        in_specs=[
            pl.BlockSpec((tile_rows, _LANES), in_index),
            pl.BlockSpec((tile_rows, _LANES), in_index),
        ],
        out_specs=pl.BlockSpec((1, 3, _SUBLANES, _LANES),
                               lambda c, i: (c, 0, 0, 0)),
        compiler_params=pltpu.CompilerParams(
            dimension_semantics=("parallel", "arbitrary"),
            vmem_limit_bytes=32 * 1024 * 1024,
        ),
        cost_estimate=cost,
    )(pred2d, gt2d)

    pos_sum = jnp.sum(partials[:, 0])
    neg_sum = jnp.sum(partials[:, 1])
    num_pos = jnp.sum(partials[:, 2])

    loss = jnp.where(num_pos == 0.0,
                     -neg_sum,
                     -(pos_sum + neg_sum) / jnp.maximum(num_pos, 1.0))
    return loss + EPS


def _reference_focal_loss(pred, gt):
    """Plain-JAX mirror of the PyTorch _neg_loss + eps."""
    pred = pred.astype(jnp.float32)
    gt = gt.astype(jnp.float32)
    pos_inds = (gt == 1.0).astype(jnp.float32)
    neg_inds = (gt < 1.0).astype(jnp.float32)
    neg_w = (1.0 - gt) ** 4
    pos_loss = jnp.sum(jnp.log(pred + EPS) * (1.0 - pred) ** 2 * pos_inds)
    neg_loss = jnp.sum(jnp.log(1.0 - pred + EPS) * pred ** 2 * neg_w * neg_inds)
    num_pos = jnp.sum(pos_inds)
    loss = jnp.where(num_pos == 0.0,
                     -neg_loss,
                     -(pos_loss + neg_loss) / jnp.maximum(num_pos, 1.0))
    return loss + EPS


def _make_inputs(key, shape, pos_frac):
    k1, k2, k3 = jax.random.split(key, 3)
    # Heatmap-style inputs: pred in (0,1) (post-sigmoid), gt in [0,1] with a
    # sprinkling of exact-1 Gaussian peaks.
    pred = jax.nn.sigmoid(jax.random.normal(k1, shape, dtype=jnp.float32))
    gt = jax.random.uniform(k2, shape, dtype=jnp.float32) * 0.95
    if pos_frac > 0.0:
        peaks = jax.random.bernoulli(k3, pos_frac, shape)
        gt = jnp.where(peaks, 1.0, gt)
    return pred, gt


if __name__ == "__main__":
    key = jax.random.PRNGKey(0)
    cases = [
        ((2, 4, 16, 16), 0.05),    # heatmap-style, exact (rows,128) fit
        ((3, 5, 7, 11), 0.10),     # ragged numel -> small pad + in-kernel mask
        ((2, 4, 24, 24), 0.0),     # no positives -> num_pos == 0 branch
        ((1, 4, 256, 256), 0.02),  # multi-chunk fused inner loop
    ]
    for shape, frac in cases:
        key, sub = jax.random.split(key)
        pred, gt = _make_inputs(sub, shape, frac)
        out = focal_loss(pred, gt)
        jax.block_until_ready(out)
        ref = _reference_focal_loss(pred, gt)
        assert jnp.allclose(out, ref, rtol=1e-4, atol=1e-5), (shape, out, ref)

    print("KERNEL_OK")
</pallas_src>

<mosaic_0001>
module attributes {stable_mosaic.version = 11 : i64} {
  func.func @kernel(%arg0: i32, %arg1: i32, %arg2: memref<16x128xf32, #tpu.memory_space<vmem>>, %arg3: memref<16x128xf32, #tpu.memory_space<vmem>>, %arg4: memref<1x3x8x128xf32, #tpu.memory_space<vmem>>) attributes {dimension_semantics = [#tpu.dimension_semantics<parallel>, #tpu.dimension_semantics<arbitrary>], iteration_bounds = array<i64: 1, 1>, scalar_prefetch = 0 : i64, scratch_operands = 0 : i64, tpu.core_type = #tpu.core_type<tc>, window_params = [{transform_indices = @transform_0, window_bounds = array<i64: 16, 128>}, {transform_indices = @transform_1, window_bounds = array<i64: 16, 128>}, {transform_indices = @transform_2, window_bounds = array<i64: 1, 3, 8, 128>}]} {
    %c0_i32 = arith.constant 0 : i32
    %0 = arith.cmpi eq, %arg1, %c0_i32 : i32
    %1 = arith.extui %0 : i1 to i32
    %c0_i32_0 = arith.constant 0 : i32
    %2 = arith.cmpi ne, %1, %c0_i32_0 : i32
    scf.if %2 {
      %cst_37 = arith.constant 0.000000e+00 : f32
      %63 = vector.broadcast %cst_37 : f32 to vector<1x3x8x128xf32>
      %c0_38 = arith.constant 0 : index
      %c0_39 = arith.constant 0 : index
      %c0_40 = arith.constant 0 : index
      %c0_41 = arith.constant 0 : index
      %64 = vector.load %arg4[%c0_38, %c0_39, %c0_40, %c0_41] : memref<1x3x8x128xf32, #tpu.memory_space<vmem>>, vector<1x3x8x128xf32>
      tpu.vector_store %arg4[%c0_38, %c0_39, %c0_40, %c0_41], %63 {strides = array<i32>} : memref<1x3x8x128xf32, #tpu.memory_space<vmem>>, vector<1x3x8x128xf32>,
    } else {
    }
    %cst = arith.constant 0.000000e+00 : f32
    %3 = vector.broadcast %cst : f32 to vector<8x128xf32>
    %c0_i32_1 = arith.constant 0 : i32
    %c16_i32 = arith.constant 16 : i32
    %4 = arith.muli %c0_i32_1, %c16_i32 : i32
    %5 = tpu.assume_multiple %4, 16 : i32
    %6 = arith.index_cast %5 : i32 to index
    %c0 = arith.constant 0 : index
    %7 = vector.load %arg2[%6, %c0] : memref<16x128xf32, #tpu.memory_space<vmem>>, vector<16x128xf32>
    %8 = arith.index_cast %5 : i32 to index
    %c0_2 = arith.constant 0 : index
    %9 = vector.load %arg3[%8, %c0_2] : memref<16x128xf32, #tpu.memory_space<vmem>>, vector<16x128xf32>
    %cst_3 = arith.constant 1.000000e+00 : f32
    %10 = vector.broadcast %cst_3 : f32 to vector<16x128xf32>
    %11 = arith.cmpf oeq, %9, %10 : vector<16x128xf32>
    %cst_4 = arith.constant 1.000000e+00 : f32
    %12 = vector.broadcast %cst_4 : f32 to vector<16x128xf32>
    %13 = arith.cmpf olt, %9, %12 : vector<16x128xf32>
    %cst_5 = arith.constant 1.000000e+00 : f32
    %14 = vector.broadcast %cst_5 : f32 to vector<16x128xf32>
    %15 = arith.subf %14, %7 : vector<16x128xf32>
    %cst_6 = arith.constant 1.000000e+00 : f32
    %16 = vector.broadcast %cst_6 : f32 to vector<16x128xf32>
    %17 = arith.subf %16, %9 : vector<16x128xf32>
    %18 = arith.mulf %17, %17 : vector<16x128xf32>
    %19 = arith.mulf %18, %18 : vector<16x128xf32>
    %20 = arith.select %11, %7, %15 : vector<16x128xi1>, vector<16x128xf32>
    %cst_7 = arith.constant 9.99999993E-9 : f32
    %21 = vector.broadcast %cst_7 : f32 to vector<16x128xf32>
    %22 = arith.addf %20, %21 : vector<16x128xf32>
    %23 = math.log %22 : vector<16x128xf32>
    %24 = arith.mulf %15, %15 : vector<16x128xf32>
    %25 = arith.mulf %23, %24 : vector<16x128xf32>
    %cst_8 = arith.constant 0.000000e+00 : f32
    %26 = vector.broadcast %cst_8 : f32 to vector<16x128xf32>
    %27 = arith.select %11, %25, %26 : vector<16x128xi1>, vector<16x128xf32>
    %28 = arith.mulf %7, %7 : vector<16x128xf32>
    %29 = arith.mulf %23, %28 : vector<16x128xf32>
    %30 = arith.mulf %29, %19 : vector<16x128xf32>
    %cst_9 = arith.constant 0.000000e+00 : f32
    %31 = vector.broadcast %cst_9 : f32 to vector<16x128xf32>
    %32 = arith.select %13, %30, %31 : vector<16x128xi1>, vector<16x128xf32>
    %cst_10 = arith.constant 1.000000e+00 : f32
    %cst_11 = arith.constant 0.000000e+00 : f32
    %33 = vector.broadcast %cst_10 : f32 to vector<16x128xf32>
    %34 = vector.broadcast %cst_11 : f32 to vector<16x128xf32>
    %35 = arith.select %11, %33, %34 : vector<16x128xi1>, vector<16x128xf32>
    %36 = vector.shape_cast %27 : vector<16x128xf32> to vector<2x8x128xf32>
    %cst_12 = arith.constant dense<0.000000e+00> : vector<8x128xf32>
    %37 = vector.multi_reduction <add>, %36, %cst_12 [0] : vector<2x8x128xf32> to vector<8x128xf32>
    %38 = arith.addf %3, %37 : vector<8x128xf32>
    %39 = vector.shape_cast %32 : vector<16x128xf32> to vector<2x8x128xf32>
    %cst_13 = arith.constant dense<0.000000e+00> : vector<8x128xf32>
    %40 = vector.multi_reduction <add>, %39, %cst_13 [0] : vector<2x8x128xf32> to vector<8x128xf32>
    %41 = arith.addf %3, %40 : vector<8x128xf32>
    %42 = vector.shape_cast %35 : vector<16x128xf32> to vector<2x8x128xf32>
    %cst_14 = arith.constant dense<0.000000e+00> : vector<8x128xf32>
    %43 = vector.multi_reduction <add>, %42, %cst_14 [0] : vector<2x8x128xf32> to vector<8x128xf32>
    %44 = arith.addf %3, %43 : vector<8x128xf32>
    %c1_i32 = arith.constant 1 : i32
    %c0_15 = arith.constant 0 : index
    %c0_16 = arith.constant 0 : index
    %c0_17 = arith.constant 0 : index
    %c0_18 = arith.constant 0 : index
    %45 = vector.load %arg4[%c0_15, %c0_16, %c0_17, %c0_18] : memref<1x3x8x128xf32, #tpu.memory_space<vmem>>, vector<1x1x8x128xf32>
    %46 = vector.shape_cast %45 : vector<1x1x8x128xf32> to vector<8x128xf32>
    %47 = arith.addf %46, %38 : vector<8x128xf32>
    %c0_19 = arith.constant 0 : index
    %c0_20 = arith.constant 0 : index
    %c0_21 = arith.constant 0 : index
    %c0_22 = arith.constant 0 : index
    %48 = vector.load %arg4[%c0_19, %c0_20, %c0_21, %c0_22] : memref<1x3x8x128xf32, #tpu.memory_space<vmem>>, vector<1x1x8x128xf32>
    %49 = vector.shape_cast %48 : vector<1x1x8x128xf32> to vector<8x128xf32>
    %50 = vector.shape_cast %47 : vector<8x128xf32> to vector<1x1x8x128xf32>
    tpu.vector_store %arg4[%c0_19, %c0_20, %c0_21, %c0_22], %50 {strides = array<i32>} : memref<1x3x8x128xf32, #tpu.memory_space<vmem>>, vector<1x1x8x128xf32>,
    %c0_23 = arith.constant 0 : index
    %c1 = arith.constant 1 : index
    %c0_24 = arith.constant 0 : index
    %c0_25 = arith.constant 0 : index
    %51 = vector.load %arg4[%c0_23, %c1, %c0_24, %c0_25] : memref<1x3x8x128xf32, #tpu.memory_space<vmem>>, vector<1x1x8x128xf32>
    %52 = vector.shape_cast %51 : vector<1x1x8x128xf32> to vector<8x128xf32>
    %53 = arith.addf %52, %41 : vector<8x128xf32>
    %c0_26 = arith.constant 0 : index
    %c1_27 = arith.constant 1 : index
    %c0_28 = arith.constant 0 : index
    %c0_29 = arith.constant 0 : index
    %54 = vector.load %arg4[%c0_26, %c1_27, %c0_28, %c0_29] : memref<1x3x8x128xf32, #tpu.memory_space<vmem>>, vector<1x1x8x128xf32>
    %55 = vector.shape_cast %54 : vector<1x1x8x128xf32> to vector<8x128xf32>
    %56 = vector.shape_cast %53 : vector<8x128xf32> to vector<1x1x8x128xf32>
    tpu.vector_store %arg4[%c0_26, %c1_27, %c0_28, %c0_29], %56 {strides = array<i32>} : memref<1x3x8x128xf32, #tpu.memory_space<vmem>>, vector<1x1x8x128xf32>,
    %c0_30 = arith.constant 0 : index
    %c2 = arith.constant 2 : index
    %c0_31 = arith.constant 0 : index
    %c0_32 = arith.constant 0 : index
    %57 = vector.load %arg4[%c0_30, %c2, %c0_31, %c0_32] : memref<1x3x8x128xf32, #tpu.memory_space<vmem>>, vector<1x1x8x128xf32>
    %58 = vector.shape_cast %57 : vector<1x1x8x128xf32> to vector<8x128xf32>
    %59 = arith.addf %58, %44 : vector<8x128xf32>
    %c0_33 = arith.constant 0 : index
    %c2_34 = arith.constant 2 : index
    %c0_35 = arith.constant 0 : index
    %c0_36 = arith.constant 0 : index
    %60 = vector.load %arg4[%c0_33, %c2_34, %c0_35, %c0_36] : memref<1x3x8x128xf32, #tpu.memory_space<vmem>>, vector<1x1x8x128xf32>
    %61 = vector.shape_cast %60 : vector<1x1x8x128xf32> to vector<8x128xf32>
    %62 = vector.shape_cast %59 : vector<8x128xf32> to vector<1x1x8x128xf32>
    tpu.vector_store %arg4[%c0_33, %c2_34, %c0_35, %c0_36], %62 {strides = array<i32>} : memref<1x3x8x128xf32, #tpu.memory_space<vmem>>, vector<1x1x8x128xf32>,
    return
  }
  func.func @transform_0(%arg0: i32, %arg1: i32) -> (i32, i32) {
    %c1_i32 = arith.constant 1 : i32
    %0 = arith.muli %arg0, %c1_i32 : i32
    %1 = arith.addi %0, %arg1 : i32
    %c0_i32 = arith.constant 0 : i32
    %2 = arith.minsi %1, %c0_i32 : i32
    %c0_i32_0 = arith.constant 0 : i32
    %c0_i32_1 = arith.constant 0 : i32
    return %2, %c0_i32_0 : i32, i32
  }
  func.func @transform_1(%arg0: i32, %arg1: i32) -> (i32, i32) {
    %c1_i32 = arith.constant 1 : i32
    %0 = arith.muli %arg0, %c1_i32 : i32
    %1 = arith.addi %0, %arg1 : i32
    %c0_i32 = arith.constant 0 : i32
    %2 = arith.minsi %1, %c0_i32 : i32
    %c0_i32_0 = arith.constant 0 : i32
    %c0_i32_1 = arith.constant 0 : i32
    return %2, %c0_i32_0 : i32, i32
  }
  func.func @transform_2(%arg0: i32, %arg1: i32) -> (i32, i32, i32, i32) {
    %c0_i32 = arith.constant 0 : i32
    %c0_i32_0 = arith.constant 0 : i32
    %c0_i32_1 = arith.constant 0 : i32
    %c0_i32_2 = arith.constant 0 : i32
    return %arg0, %c0_i32, %c0_i32_0, %c0_i32_1 : i32, i32, i32, i32
  }
}

</mosaic_0001>

<llo_original>
// kernel: tpu_custom_call.1
$region0: #{tpu_custom_call.1}
  #allocation0 [shape = 'u32[]', space=smem, size = 0x4, offset = 0x4, fixed_abs, tag = 'smem constant byte address 0x4 - core index']
  #allocation1 [shape = 'u32[72,128]{1,0:T(1,128)}', space=vmem, size = 0x9000, scoped, tag = 'internal scratch']
  %s0 = inlined_call_operand.hbm [shape: f32[16,128], index: 0, kind: input, shape index: {}]
  %s1 = inlined_call_operand.hbm [shape: f32[16,128], index: 1, kind: input, shape index: {}]
  %s2 = inlined_call_operand.hbm [shape: f32[1,3,8,128], index: 2, kind: output, shape index: {}]
  %s3 = sld [smem:[#allocation0]]
  $region30: #{tpu_custom_call.1} parent=0
    _
  %s5 = ssub.s32 1, %s3
  %s6 = scalar_select 0, %s5, %s3
  $region1: #{tpu_custom_call.1} parent=0
    #allocation2 [shape = 'u8[8192]{0}', space=vmem, size = 0x2000, scoped, tag = 'input window, operand 0, single buffered']
    #allocation3 [shape = 's32[1]{0}', space=sflag, size = 0x4, scoped, tag = 'scoped memory for tpu_custom_call.1']
    #allocation4 [shape = 's32[1]{0}', space=sflag, size = 0x4, scoped, tag = 'scoped memory for tpu_custom_call.1']
    #allocation5 [shape = 'u8[8192]{0}', space=vmem, size = 0x2000, scoped, tag = 'input window, operand 1, single buffered']
    #allocation6 [shape = 's32[1]{0}', space=sflag, size = 0x4, scoped, tag = 'scoped memory for tpu_custom_call.1']
    #allocation7 [shape = 'u8[12288]{0}', space=vmem, size = 0x3000, scoped, tag = 'output window, operand 0, single buffered']
    %7 = vsyncpa [#allocation3], 0
    %8 = vsyncpa [#allocation6], 0
    %9 = vsyncpa [#allocation4], 0
    // Predicated region
    $region2: #{tpu_custom_call.1} parent=1 // pred_check
      _
    $region3: #{tpu_custom_call.1} parent=1 // pred_check_branch
      %11 = sbr.rel (0) target = $region5
    $region4: #{tpu_custom_call.1} parent=1 // pred_region
      %s12 = sadd.s32 0, 0
      %p13 = scmp.lt.s32.totalorder %s12, 0
      %s14 = scalar_select %p13, %s12, 0
      %s15 = smul.u32 2, %s14
      %17 = vsyncadd [#allocation3], 0
      %s18 = smul.addr %s15, 8
      %s19 = scalar_lea.hbm %s0, %s18
      %s20 = sshll.u32 %s19, 4
      %s21 = int_to_ptr.hbm [resolvable:$true] %s20
      %s22 = sshll.u32 [#allocation2], 4
      %s23 = int_to_ptr.vmem [resolvable:$true] %s22
      %28 = dma.hbm_to_vmem [thread:$0]  %s21, 256, %s23, [#allocation3], 128, 128, 8
    $region5: #{tpu_custom_call.1} parent=1 // pred_fallthru
      _
    // Predicated region
    $region6: #{tpu_custom_call.1} parent=1 // pred_check
      _
    $region7: #{tpu_custom_call.1} parent=1 // pred_check_branch
      %30 = sbr.rel (0) target = $region9
    $region8: #{tpu_custom_call.1} parent=1 // pred_region
      %s31 = sadd.s32 0, 0
      %p32 = scmp.lt.s32.totalorder %s31, 0
      %s33 = scalar_select %p32, %s31, 0
      %s34 = smul.u32 2, %s33
      %36 = vsyncadd [#allocation6], 0
      %s37 = smul.addr %s34, 8
      %s38 = scalar_lea.hbm %s1, %s37
      %s39 = sshll.u32 %s38, 4
      %s40 = int_to_ptr.hbm [resolvable:$true] %s39
      %s41 = sshll.u32 [#allocation5], 4
      %s42 = int_to_ptr.vmem [resolvable:$true] %s41
      %47 = dma.hbm_to_vmem [thread:$0]  %s40, 256, %s42, [#allocation6], 128, 128, 8
    $region9: #{tpu_custom_call.1} parent=1 // pred_fallthru
      _
    // Predicated region
    $region10: #{tpu_custom_call.1} parent=1 // pred_check
      _
    $region11: #{tpu_custom_call.1} parent=1 // pred_check_branch
      %49 = sbr.rel (0) target = $region13
    $region12: #{tpu_custom_call.1} parent=1 // pred_region
      %51 = dma.done [#allocation3], 256
    $region13: #{tpu_custom_call.1} parent=1 // pred_fallthru
      _
    // Predicated region
    $region14: #{tpu_custom_call.1} parent=1 // pred_check
      _
    $region15: #{tpu_custom_call.1} parent=1 // pred_check_branch
      %53 = sbr.rel (0) target = $region17
    $region16: #{tpu_custom_call.1} parent=1 // pred_region
      %55 = dma.done [#allocation6], 256
    $region17: #{tpu_custom_call.1} parent=1 // pred_fallthru
      _
    %s56 = sadd.s32 0, 0
    %p57 = scmp.lt.s32.totalorder %s56, 0
    %s58 = scalar_select %p57, %s56, 0
    %s59 = smul.u32 2, %s58
    %s60 = sadd.s32 0, 0
    %p61 = scmp.lt.s32.totalorder %s60, 0
    %s62 = scalar_select %p61, %s60, 0
    %s63 = smul.u32 2, %s62
    %p64 = scmp.eq.s32.totalorder 0, 0
    // Predicated region
    $region18: #{tpu_custom_call.1} parent=1 // pred_check
      %p65 = pneg %p64
    $region19: #{tpu_custom_call.1} parent=1 // pred_check_branch
      %67 = sbr.rel (%p65) target = $region21
    $region20: #{tpu_custom_call.1} parent=1 // pred_region
      %68 = vst [vmem:[#allocation7] sm:$0xff] 0.0
      %69 = vst [vmem:[#allocation7 + $0x8] sm:$0xff] 0.0
      %70 = vst [vmem:[#allocation7 + $0x10] sm:$0xff] 0.0
    $region21: #{tpu_custom_call.1} parent=1 // pred_fallthru
      _
    %v71 = vld [vmem:[#allocation2] sm:$0xff]
    %v72 = vld [vmem:[#allocation2 + $0x8] sm:$0xff]
    %v73 = vld [vmem:[#allocation5] sm:$0xff]
    %v74 = vld [vmem:[#allocation5 + $0x8] sm:$0xff]
    %vm75 = vcmp.eq.f32.partialorder %v73, 1.0
    %vm76 = vcmp.eq.f32.partialorder %v74, 1.0
    %vm77 = vcmp.lt.f32.partialorder %v73, 1.0
    %vm78 = vcmp.lt.f32.partialorder %v74, 1.0
    %v79 = vsub.f32 1.0, %v71
    %v80 = vsub.f32 1.0, %v72
    %v81 = vsub.f32 1.0, %v73
    %v82 = vsub.f32 1.0, %v74
    %v83 = vmul.f32 %v81, %v81
    %v84 = vmul.f32 %v82, %v82
    %v85 = vmul.f32 %v83, %v83
    %v86 = vmul.f32 %v84, %v84
    %v87 = vsel %vm75, %v71, %v79
    %v88 = vsel %vm76, %v72, %v80
    %v89 = vadd.f32 %v87, 1e-08
    %v90 = vadd.f32 %v88, 1e-08
    %v91 = vlog2.pop %v89
    %v92 = vmul.f32 %v91, 0.6931472
    %v93 = vlog2.pop %v90
    %v94 = vmul.f32 %v93, 0.6931472
    %v95 = vmul.f32 %v79, %v79
    %v96 = vmul.f32 %v80, %v80
    %v97 = vmul.f32 %v92, %v95
    %v98 = vmul.f32 %v94, %v96
    %v99 = vsel %vm75, %v97, 0.0
    %v100 = vsel %vm76, %v98, 0.0
    %v101 = vmul.f32 %v71, %v71
    %v102 = vmul.f32 %v72, %v72
    %v103 = vmul.f32 %v92, %v101
    %v104 = vmul.f32 %v94, %v102
    %v105 = vmul.f32 %v103, %v85
    %v106 = vmul.f32 %v104, %v86
    %v107 = vsel %vm77, %v105, 0.0
    %v108 = vsel %vm78, %v106, 0.0
    %v109 = vsel %vm75, 1.0, 0.0
    %v110 = vsel %vm76, 1.0, 0.0
    %v111 = vadd.f32 %v99, %v100
    %v112 = vadd.f32 %v111, 0.0
    %v113 = vadd.f32 %v107, %v108
    %v114 = vadd.f32 %v113, 0.0
    %v115 = vadd.f32 %v109, %v110
    %v116 = vadd.f32 %v115, 0.0
    %v117 = vld [vmem:[#allocation7] sm:$0xff]
    %v118 = vadd.f32 %v117, %v112
    %119 = vst [vmem:[#allocation7] sm:$0xff] %v118
    %s120 = scalar_lea.vmem [#allocation7], 8
    %v121 = vld [vmem:[%s120] sm:$0xff]
    %v122 = vadd.f32 %v121, %v114
    %123 = vst [vmem:[%s120] sm:$0xff] %v122
    %s124 = scalar_lea.vmem [#allocation7], 16
    %v125 = vld [vmem:[%s124] sm:$0xff]
    %v126 = vadd.f32 %v125, %v116
    %127 = vst [vmem:[%s124] sm:$0xff] %v126
    // Predicated region
    $region22: #{tpu_custom_call.1} parent=1 // pred_check
      _
    $region23: #{tpu_custom_call.1} parent=1 // pred_check_branch
      %129 = sbr.rel (0) target = $region25
    $region24: #{tpu_custom_call.1} parent=1 // pred_region
      %131 = vsyncadd [#allocation4], 0
      %s132 = sshll.u32 [#allocation7], 4
      %s133 = int_to_ptr.vmem [resolvable:$true] %s132
      %s134 = sshll.u32 %s2, 4
      %s135 = int_to_ptr.hbm [resolvable:$true] %s134
      %140 = dma.vmem_to_hbm [thread:$0]  %s133, 384, %s135, [#allocation4], 128, 128, 8
    $region25: #{tpu_custom_call.1} parent=1 // pred_fallthru
      _
    // Predicated region
    $region26: #{tpu_custom_call.1} parent=1 // pred_check
      _
    $region27: #{tpu_custom_call.1} parent=1 // pred_check_branch
      %142 = sbr.rel (0) target = $region29
    $region28: #{tpu_custom_call.1} parent=1 // pred_region
      %144 = dma.done [#allocation4], 384
    $region29: #{tpu_custom_call.1} parent=1 // pred_fallthru
      _
    %145 = vsyncpa [#allocation3], 1
    %146 = vsyncpa [#allocation6], 1
    %147 = vsyncpa [#allocation4], 1

</llo_original>
